<compile_context>
chip_gen: v6e
topology: v6e:2x2x1
jax: 0.10.0
libtpu: 0.0.40
codegen_flags: <defaults>
</compile_context>

<pallas_src>
import functools

import jax
import jax.numpy as jnp
from jax import lax
from jax.experimental import pallas as pl
from jax.experimental.pallas import tpu as pltpu

EPS = 1e-5
TAP_OFFSETS = [(oy, ox) for oy in (-1, 0, 1) for ox in (-1, 0, 1)]  # ky*3 + kx order


def convbn_relu_kernel(x_ref, w_ref, gb_ref, o_ref, xpad_ref, p_ref, *, W, pad):
    # x_ref:    (N, Cin, H*W)   flat NCHW input (free reshape, channel on sublanes)
    # w_ref:    (Cout, 9*Cin_pad) tap-major conv weights (per-tap blocks zero padded)
    # gb_ref:   (Cout, 2)        [:,0] = gamma, [:,1] = beta
    # o_ref:    (N, Cout, H*W)
    # xpad_ref: (Cin, pad + H*W + pad) scratch: one zero-padded flat image
    # p_ref:    (9*Cin_pad, N*H*W)     scratch: im2col patch matrix for the whole batch
    N, Cin, HW = x_ref.shape
    Cout, Kp = w_ref.shape
    Cin_pad = Kp // 9

    # Row-wrap masks for the horizontal taps (flat h*W+w layout wraps across rows).
    wcol = lax.broadcasted_iota(jnp.int32, (Cin, HW), 1) % W
    left_ok = wcol >= 1           # valid source lane when ox = -1
    right_ok = wcol <= W - 2      # valid source lane when ox = +1

    # Zero scratches once: pad regions of xpad stay zero; unused rows of the
    # tap-padded patch matrix stay zero (they meet zero weight columns).
    xpad_ref[...] = jnp.zeros_like(xpad_ref)
    p_ref[...] = jnp.zeros_like(p_ref)

    # In-kernel im2col: per image, drop the flat slab between the zero pads, then each
    # 3x3 tap is a static lane-shifted slice of it (h-boundary handled by the pads).
    for n in range(N):                                   # static, N = 2
        xpad_ref[:, pad:pad + HW] = x_ref[n]
        for t, (oy, ox) in enumerate(TAP_OFFSETS):
            s = oy * W + ox
            tap = xpad_ref[:, pad + s:pad + s + HW]      # (Cin, HW)
            if ox == -1:
                tap = jnp.where(left_ok, tap, 0.0)
            elif ox == 1:
                tap = jnp.where(right_ok, tap, 0.0)
            p_ref[t * Cin_pad:t * Cin_pad + Cin, n * HW:(n + 1) * HW] = tap

    # One MXU matmul for the whole batch: (Cout, Kp) @ (Kp, N*H*W).
    acc = jnp.dot(w_ref[...], p_ref[...], preferred_element_type=jnp.float32)

    # Training-mode BN statistics per channel, two-pass for fp32 accuracy.
    mean = jnp.mean(acc, axis=1, keepdims=True)          # (Cout, 1)
    centered = acc - mean
    var = jnp.mean(centered * centered, axis=1, keepdims=True)

    gamma = gb_ref[:, 0:1]
    beta = gb_ref[:, 1:2]
    scale = gamma * lax.rsqrt(var + EPS)                 # (Cout, 1)
    out = jnp.maximum(centered * scale + beta, 0.0)      # conv bias cancels under BN

    for n in range(N):                                   # lane-dense 256-wide stores
        o_ref[n, :, :] = out[:, n * HW:(n + 1) * HW]


@jax.jit
def conv_batch_norm(x_nchw, w_oihw, gamma, beta):
    """x_nchw: (N, Cin, H, W) f32.  Returns (N, Cout, H, W) f32 (conv -> BN(train) -> ReLU)."""
    N, Cin, H, W = x_nchw.shape
    Cout = w_oihw.shape[0]
    HW = H * W
    M = N * HW
    Cin_pad = ((Cin + 7) // 8) * 8            # keep per-tap scratch stores 8-sublane aligned
    Kp = 9 * Cin_pad
    pad = ((W + 1 + 127) // 128) * 128        # 128-aligned zero pad for the flat image slab

    x_flat = x_nchw.reshape(N, Cin, HW)       # free reshape, no transpose / no duplication

    # OIHW -> (tap, Cout, Cin) -> zero-padded (Cout, 9*Cin_pad), matching kernel tap order.
    w_taps = jnp.transpose(w_oihw, (2, 3, 0, 1)).reshape(9, Cout, Cin)
    w_mat = jnp.zeros((9, Cout, Cin_pad), w_oihw.dtype).at[:, :, :Cin].set(w_taps)
    w_mat = jnp.transpose(w_mat, (1, 0, 2)).reshape(Cout, Kp)

    gb = jnp.stack([gamma, beta], axis=1)     # (Cout, 2) — one operand instead of three

    kernel = functools.partial(convbn_relu_kernel, W=W, pad=pad)
    vmem = pl.BlockSpec(memory_space=pltpu.MemorySpace.VMEM)

    out = pl.pallas_call(
        kernel,
        out_shape=jax.ShapeDtypeStruct((N, Cout, HW), jnp.float32),
        in_specs=[vmem, vmem, vmem],
        out_specs=vmem,
        scratch_shapes=[
            pltpu.VMEM((Cin, pad + HW + pad), jnp.float32),   # padded flat image
            pltpu.VMEM((Kp, M), jnp.float32),                 # im2col patch matrix
        ],
        cost_estimate=pl.CostEstimate(
            flops=2 * Cout * 9 * Cin * M,
            transcendentals=Cout,
            bytes_accessed=4 * (N * Cin * HW + Cout * Kp + Cout * 2 + N * Cout * HW),
        ),
    )(x_flat, w_mat, gb)

    return out.reshape(N, Cout, H, W)         # free reshape back to NCHW


def reference(x_nchw, w_oihw, bias, gamma, beta):
    """Pure-JAX reference mirroring PyTorch Conv2d(bias) -> BatchNorm2d(train) -> ReLU."""
    x_nhwc = jnp.transpose(x_nchw, (0, 2, 3, 1))
    w_hwio = jnp.transpose(w_oihw, (2, 3, 1, 0))
    out = lax.conv_general_dilated(
        x_nhwc, w_hwio, window_strides=(1, 1), padding="SAME",
        dimension_numbers=("NHWC", "HWIO", "NHWC"))
    out = out + bias[None, None, None, :]
    mean = jnp.mean(out, axis=(0, 1, 2), keepdims=True)
    var = jnp.mean((out - mean) ** 2, axis=(0, 1, 2), keepdims=True)
    out = (out - mean) * lax.rsqrt(var + EPS)
    out = out * gamma[None, None, None, :] + beta[None, None, None, :]
    out = jnp.maximum(out, 0.0)
    return jnp.transpose(out, (0, 3, 1, 2))


if __name__ == "__main__":
    # Small shapes consistent with the module: N=2, Cin=4, Cout=8, H=W=16.
    N, Cin, Cout, H, W = 2, 4, 8, 16, 16

    key = jax.random.PRNGKey(0)
    kx, kw, kb, kg, kbeta = jax.random.split(key, 5)

    x = jax.random.normal(kx, (N, Cin, H, W), dtype=jnp.float32)
    fan_in = Cin * 3 * 3
    bound = 1.0 / (fan_in ** 0.5)
    w = jax.random.uniform(kw, (Cout, Cin, 3, 3), jnp.float32, -bound, bound)
    b = jax.random.uniform(kb, (Cout,), jnp.float32, -bound, bound)  # cancels under BN
    gamma = 1.0 + 0.1 * jax.random.normal(kg, (Cout,), jnp.float32)
    beta = 0.1 * jax.random.normal(kbeta, (Cout,), jnp.float32)

    out = conv_batch_norm(x, w, gamma, beta)
    out = jax.block_until_ready(out)

    ref = reference(x, w, b, gamma, beta)
    assert out.shape == (N, Cout, H, W)
    assert jnp.allclose(out, ref, atol=1e-4, rtol=1e-4), "mismatch vs reference"

    print("KERNEL_OK")
</pallas_src>

<mosaic_0001>
module attributes {stable_mosaic.version = 11 : i64} {
  func.func @convbn_relu_kernel(%arg0: memref<2x4x256xf32, #tpu.memory_space<vmem>>, %arg1: memref<8x72xf32, #tpu.memory_space<vmem>>, %arg2: memref<8x2xf32, #tpu.memory_space<vmem>>, %arg3: memref<2x8x256xf32, #tpu.memory_space<vmem>>, %arg4: memref<4x512xf32, #tpu.memory_space<vmem>>, %arg5: memref<72x512xf32, #tpu.memory_space<vmem>>) attributes {dimension_semantics = [], scalar_prefetch = 0 : i64, scratch_operands = 2 : i64, tpu.core_type = #tpu.core_type<tc>} {
    %0 = tpu.iota {dimensions = array<i32: 1>} : vector<4x256xi32>
    %c16_i32 = arith.constant 16 : i32
    %c0_i32 = arith.constant 0 : i32
    %1 = arith.cmpi eq, %c16_i32, %c0_i32 : i32
    %c1_i32 = arith.constant 1 : i32
    %2 = arith.select %1, %c1_i32, %c16_i32 : i32
    %3 = vector.broadcast %2 : i32 to vector<4x256xi32>
    %4 = arith.remsi %0, %3 : vector<4x256xi32>
    %c0_i32_0 = arith.constant 0 : i32
    %5 = vector.broadcast %c0_i32_0 : i32 to vector<4x256xi32>
    %6 = arith.cmpi ne, %4, %5 : vector<4x256xi32>
    %c0_i32_1 = arith.constant 0 : i32
    %7 = vector.broadcast %c0_i32_1 : i32 to vector<4x256xi32>
    %8 = arith.cmpi slt, %4, %7 : vector<4x256xi32>
    %c0_i32_2 = arith.constant 0 : i32
    %9 = arith.cmpi slt, %2, %c0_i32_2 : i32
    %10 = vector.broadcast %9 : i1 to vector<4x256xi1>
    %11 = vector.broadcast %10 : vector<4x256xi1> to vector<4x256xi1>
    %12 = arith.xori %8, %11 : vector<4x256xi1>
    %13 = arith.andi %12, %6 : vector<4x256xi1>
    %14 = vector.broadcast %2 : i32 to vector<4x256xi32>
    %15 = arith.addi %4, %14 : vector<4x256xi32>
    %16 = arith.select %13, %15, %4 : vector<4x256xi1>, vector<4x256xi32>
    %c1_i32_3 = arith.constant 1 : i32
    %17 = vector.broadcast %c1_i32_3 : i32 to vector<4x256xi32>
    %18 = arith.cmpi sge, %16, %17 : vector<4x256xi32>
    %c14_i32 = arith.constant 14 : i32
    %19 = vector.broadcast %c14_i32 : i32 to vector<4x256xi32>
    %20 = arith.cmpi sle, %16, %19 : vector<4x256xi32>
    %cst = arith.constant 0.000000e+00 : f32
    %21 = vector.broadcast %cst : f32 to vector<4x512xf32>
    %c0 = arith.constant 0 : index
    %c0_4 = arith.constant 0 : index
    %22 = vector.load %arg4[%c0, %c0_4] : memref<4x512xf32, #tpu.memory_space<vmem>>, vector<4x512xf32>
    tpu.vector_store %arg4[%c0, %c0_4], %21 {strides = array<i32>} : memref<4x512xf32, #tpu.memory_space<vmem>>, vector<4x512xf32>,
    %cst_5 = arith.constant 0.000000e+00 : f32
    %23 = vector.broadcast %cst_5 : f32 to vector<72x512xf32>
    %c0_6 = arith.constant 0 : index
    %c0_7 = arith.constant 0 : index
    %24 = vector.load %arg5[%c0_6, %c0_7] : memref<72x512xf32, #tpu.memory_space<vmem>>, vector<72x512xf32>
    tpu.vector_store %arg5[%c0_6, %c0_7], %23 {strides = array<i32>} : memref<72x512xf32, #tpu.memory_space<vmem>>, vector<72x512xf32>,
    %c0_8 = arith.constant 0 : index
    %c0_9 = arith.constant 0 : index
    %c0_10 = arith.constant 0 : index
    %25 = vector.load %arg0[%c0_8, %c0_9, %c0_10] : memref<2x4x256xf32, #tpu.memory_space<vmem>>, vector<1x4x256xf32>
    %26 = vector.shape_cast %25 : vector<1x4x256xf32> to vector<4x256xf32>
    %c0_11 = arith.constant 0 : index
    %c128 = arith.constant 128 : index
    %27 = vector.load %arg4[%c0_11, %c128] : memref<4x512xf32, #tpu.memory_space<vmem>>, vector<4x256xf32>
    tpu.vector_store %arg4[%c0_11, %c128], %26 {strides = array<i32>} : memref<4x512xf32, #tpu.memory_space<vmem>>, vector<4x256xf32>,
    %c0_12 = arith.constant 0 : index
    %c111 = arith.constant 111 : index
    %28 = vector.load %arg4[%c0_12, %c111] : memref<4x512xf32, #tpu.memory_space<vmem>>, vector<4x256xf32>
    %cst_13 = arith.constant 0.000000e+00 : f32
    %29 = vector.broadcast %cst_13 : f32 to vector<4x256xf32>
    %30 = arith.select %18, %28, %29 : vector<4x256xi1>, vector<4x256xf32>
    %c0_14 = arith.constant 0 : index
    %c0_15 = arith.constant 0 : index
    %31 = vector.load %arg5[%c0_14, %c0_15] : memref<72x512xf32, #tpu.memory_space<vmem>>, vector<4x256xf32>
    tpu.vector_store %arg5[%c0_14, %c0_15], %30 {strides = array<i32>} : memref<72x512xf32, #tpu.memory_space<vmem>>, vector<4x256xf32>,
    %c0_16 = arith.constant 0 : index
    %c112 = arith.constant 112 : index
    %32 = vector.load %arg4[%c0_16, %c112] : memref<4x512xf32, #tpu.memory_space<vmem>>, vector<4x256xf32>
    %c8 = arith.constant 8 : index
    %c0_17 = arith.constant 0 : index
    %33 = vector.load %arg5[%c8, %c0_17] : memref<72x512xf32, #tpu.memory_space<vmem>>, vector<4x256xf32>
    tpu.vector_store %arg5[%c8, %c0_17], %32 {strides = array<i32>} : memref<72x512xf32, #tpu.memory_space<vmem>>, vector<4x256xf32>,
    %c0_18 = arith.constant 0 : index
    %c113 = arith.constant 113 : index
    %34 = vector.load %arg4[%c0_18, %c113] : memref<4x512xf32, #tpu.memory_space<vmem>>, vector<4x256xf32>
    %cst_19 = arith.constant 0.000000e+00 : f32
    %35 = vector.broadcast %cst_19 : f32 to vector<4x256xf32>
    %36 = arith.select %20, %34, %35 : vector<4x256xi1>, vector<4x256xf32>
    %c16 = arith.constant 16 : index
    %c0_20 = arith.constant 0 : index
    %37 = vector.load %arg5[%c16, %c0_20] : memref<72x512xf32, #tpu.memory_space<vmem>>, vector<4x256xf32>
    tpu.vector_store %arg5[%c16, %c0_20], %36 {strides = array<i32>} : memref<72x512xf32, #tpu.memory_space<vmem>>, vector<4x256xf32>,
    %c0_21 = arith.constant 0 : index
    %c127 = arith.constant 127 : index
    %38 = vector.load %arg4[%c0_21, %c127] : memref<4x512xf32, #tpu.memory_space<vmem>>, vector<4x256xf32>
    %cst_22 = arith.constant 0.000000e+00 : f32
    %39 = vector.broadcast %cst_22 : f32 to vector<4x256xf32>
    %40 = arith.select %18, %38, %39 : vector<4x256xi1>, vector<4x256xf32>
    %c24 = arith.constant 24 : index
    %c0_23 = arith.constant 0 : index
    %41 = vector.load %arg5[%c24, %c0_23] : memref<72x512xf32, #tpu.memory_space<vmem>>, vector<4x256xf32>
    tpu.vector_store %arg5[%c24, %c0_23], %40 {strides = array<i32>} : memref<72x512xf32, #tpu.memory_space<vmem>>, vector<4x256xf32>,
    %c0_24 = arith.constant 0 : index
    %c128_25 = arith.constant 128 : index
    %42 = vector.load %arg4[%c0_24, %c128_25] : memref<4x512xf32, #tpu.memory_space<vmem>>, vector<4x256xf32>
    %c32 = arith.constant 32 : index
    %c0_26 = arith.constant 0 : index
    %43 = vector.load %arg5[%c32, %c0_26] : memref<72x512xf32, #tpu.memory_space<vmem>>, vector<4x256xf32>
    tpu.vector_store %arg5[%c32, %c0_26], %42 {strides = array<i32>} : memref<72x512xf32, #tpu.memory_space<vmem>>, vector<4x256xf32>,
    %c0_27 = arith.constant 0 : index
    %c129 = arith.constant 129 : index
    %44 = vector.load %arg4[%c0_27, %c129] : memref<4x512xf32, #tpu.memory_space<vmem>>, vector<4x256xf32>
    %cst_28 = arith.constant 0.000000e+00 : f32
    %45 = vector.broadcast %cst_28 : f32 to vector<4x256xf32>
    %46 = arith.select %20, %44, %45 : vector<4x256xi1>, vector<4x256xf32>
    %c40 = arith.constant 40 : index
    %c0_29 = arith.constant 0 : index
    %47 = vector.load %arg5[%c40, %c0_29] : memref<72x512xf32, #tpu.memory_space<vmem>>, vector<4x256xf32>
    tpu.vector_store %arg5[%c40, %c0_29], %46 {strides = array<i32>} : memref<72x512xf32, #tpu.memory_space<vmem>>, vector<4x256xf32>,
    %c0_30 = arith.constant 0 : index
    %c143 = arith.constant 143 : index
    %48 = vector.load %arg4[%c0_30, %c143] : memref<4x512xf32, #tpu.memory_space<vmem>>, vector<4x256xf32>
    %cst_31 = arith.constant 0.000000e+00 : f32
    %49 = vector.broadcast %cst_31 : f32 to vector<4x256xf32>
    %50 = arith.select %18, %48, %49 : vector<4x256xi1>, vector<4x256xf32>
    %c48 = arith.constant 48 : index
    %c0_32 = arith.constant 0 : index
    %51 = vector.load %arg5[%c48, %c0_32] : memref<72x512xf32, #tpu.memory_space<vmem>>, vector<4x256xf32>
    tpu.vector_store %arg5[%c48, %c0_32], %50 {strides = array<i32>} : memref<72x512xf32, #tpu.memory_space<vmem>>, vector<4x256xf32>,
    %c0_33 = arith.constant 0 : index
    %c144 = arith.constant 144 : index
    %52 = vector.load %arg4[%c0_33, %c144] : memref<4x512xf32, #tpu.memory_space<vmem>>, vector<4x256xf32>
    %c56 = arith.constant 56 : index
    %c0_34 = arith.constant 0 : index
    %53 = vector.load %arg5[%c56, %c0_34] : memref<72x512xf32, #tpu.memory_space<vmem>>, vector<4x256xf32>
    tpu.vector_store %arg5[%c56, %c0_34], %52 {strides = array<i32>} : memref<72x512xf32, #tpu.memory_space<vmem>>, vector<4x256xf32>,
    %c0_35 = arith.constant 0 : index
    %c145 = arith.constant 145 : index
    %54 = vector.load %arg4[%c0_35, %c145] : memref<4x512xf32, #tpu.memory_space<vmem>>, vector<4x256xf32>
    %cst_36 = arith.constant 0.000000e+00 : f32
    %55 = vector.broadcast %cst_36 : f32 to vector<4x256xf32>
    %56 = arith.select %20, %54, %55 : vector<4x256xi1>, vector<4x256xf32>
    %c64 = arith.constant 64 : index
    %c0_37 = arith.constant 0 : index
    %57 = vector.load %arg5[%c64, %c0_37] : memref<72x512xf32, #tpu.memory_space<vmem>>, vector<4x256xf32>
    tpu.vector_store %arg5[%c64, %c0_37], %56 {strides = array<i32>} : memref<72x512xf32, #tpu.memory_space<vmem>>, vector<4x256xf32>,
    %c1 = arith.constant 1 : index
    %c0_38 = arith.constant 0 : index
    %c0_39 = arith.constant 0 : index
    %58 = vector.load %arg0[%c1, %c0_38, %c0_39] : memref<2x4x256xf32, #tpu.memory_space<vmem>>, vector<1x4x256xf32>
    %59 = vector.shape_cast %58 : vector<1x4x256xf32> to vector<4x256xf32>
    %c0_40 = arith.constant 0 : index
    %c128_41 = arith.constant 128 : index
    %60 = vector.load %arg4[%c0_40, %c128_41] : memref<4x512xf32, #tpu.memory_space<vmem>>, vector<4x256xf32>
    tpu.vector_store %arg4[%c0_40, %c128_41], %59 {strides = array<i32>} : memref<4x512xf32, #tpu.memory_space<vmem>>, vector<4x256xf32>,
    %c0_42 = arith.constant 0 : index
    %c111_43 = arith.constant 111 : index
    %61 = vector.load %arg4[%c0_42, %c111_43] : memref<4x512xf32, #tpu.memory_space<vmem>>, vector<4x256xf32>
    %cst_44 = arith.constant 0.000000e+00 : f32
    %62 = vector.broadcast %cst_44 : f32 to vector<4x256xf32>
    %63 = arith.select %18, %61, %62 : vector<4x256xi1>, vector<4x256xf32>
    %c0_45 = arith.constant 0 : index
    %c256 = arith.constant 256 : index
    %64 = vector.load %arg5[%c0_45, %c256] : memref<72x512xf32, #tpu.memory_space<vmem>>, vector<4x256xf32>
    tpu.vector_store %arg5[%c0_45, %c256], %63 {strides = array<i32>} : memref<72x512xf32, #tpu.memory_space<vmem>>, vector<4x256xf32>,
    %c0_46 = arith.constant 0 : index
    %c112_47 = arith.constant 112 : index
    %65 = vector.load %arg4[%c0_46, %c112_47] : memref<4x512xf32, #tpu.memory_space<vmem>>, vector<4x256xf32>
    %c8_48 = arith.constant 8 : index
    %c256_49 = arith.constant 256 : index
    %66 = vector.load %arg5[%c8_48, %c256_49] : memref<72x512xf32, #tpu.memory_space<vmem>>, vector<4x256xf32>
    tpu.vector_store %arg5[%c8_48, %c256_49], %65 {strides = array<i32>} : memref<72x512xf32, #tpu.memory_space<vmem>>, vector<4x256xf32>,
    %c0_50 = arith.constant 0 : index
    %c113_51 = arith.constant 113 : index
    %67 = vector.load %arg4[%c0_50, %c113_51] : memref<4x512xf32, #tpu.memory_space<vmem>>, vector<4x256xf32>
    %cst_52 = arith.constant 0.000000e+00 : f32
    %68 = vector.broadcast %cst_52 : f32 to vector<4x256xf32>
    %69 = arith.select %20, %67, %68 : vector<4x256xi1>, vector<4x256xf32>
    %c16_53 = arith.constant 16 : index
    %c256_54 = arith.constant 256 : index
    %70 = vector.load %arg5[%c16_53, %c256_54] : memref<72x512xf32, #tpu.memory_space<vmem>>, vector<4x256xf32>
    tpu.vector_store %arg5[%c16_53, %c256_54], %69 {strides = array<i32>} : memref<72x512xf32, #tpu.memory_space<vmem>>, vector<4x256xf32>,
    %c0_55 = arith.constant 0 : index
    %c127_56 = arith.constant 127 : index
    %71 = vector.load %arg4[%c0_55, %c127_56] : memref<4x512xf32, #tpu.memory_space<vmem>>, vector<4x256xf32>
    %cst_57 = arith.constant 0.000000e+00 : f32
    %72 = vector.broadcast %cst_57 : f32 to vector<4x256xf32>
    %73 = arith.select %18, %71, %72 : vector<4x256xi1>, vector<4x256xf32>
    %c24_58 = arith.constant 24 : index
    %c256_59 = arith.constant 256 : index
    %74 = vector.load %arg5[%c24_58, %c256_59] : memref<72x512xf32, #tpu.memory_space<vmem>>, vector<4x256xf32>
    tpu.vector_store %arg5[%c24_58, %c256_59], %73 {strides = array<i32>} : memref<72x512xf32, #tpu.memory_space<vmem>>, vector<4x256xf32>,
    %c0_60 = arith.constant 0 : index
    %c128_61 = arith.constant 128 : index
    %75 = vector.load %arg4[%c0_60, %c128_61] : memref<4x512xf32, #tpu.memory_space<vmem>>, vector<4x256xf32>
    %c32_62 = arith.constant 32 : index
    %c256_63 = arith.constant 256 : index
    %76 = vector.load %arg5[%c32_62, %c256_63] : memref<72x512xf32, #tpu.memory_space<vmem>>, vector<4x256xf32>
    tpu.vector_store %arg5[%c32_62, %c256_63], %75 {strides = array<i32>} : memref<72x512xf32, #tpu.memory_space<vmem>>, vector<4x256xf32>,
    %c0_64 = arith.constant 0 : index
    %c129_65 = arith.constant 129 : index
    %77 = vector.load %arg4[%c0_64, %c129_65] : memref<4x512xf32, #tpu.memory_space<vmem>>, vector<4x256xf32>
    %cst_66 = arith.constant 0.000000e+00 : f32
    %78 = vector.broadcast %cst_66 : f32 to vector<4x256xf32>
    %79 = arith.select %20, %77, %78 : vector<4x256xi1>, vector<4x256xf32>
    %c40_67 = arith.constant 40 : index
    %c256_68 = arith.constant 256 : index
    %80 = vector.load %arg5[%c40_67, %c256_68] : memref<72x512xf32, #tpu.memory_space<vmem>>, vector<4x256xf32>
    tpu.vector_store %arg5[%c40_67, %c256_68], %79 {strides = array<i32>} : memref<72x512xf32, #tpu.memory_space<vmem>>, vector<4x256xf32>,
    %c0_69 = arith.constant 0 : index
    %c143_70 = arith.constant 143 : index
    %81 = vector.load %arg4[%c0_69, %c143_70] : memref<4x512xf32, #tpu.memory_space<vmem>>, vector<4x256xf32>
    %cst_71 = arith.constant 0.000000e+00 : f32
    %82 = vector.broadcast %cst_71 : f32 to vector<4x256xf32>
    %83 = arith.select %18, %81, %82 : vector<4x256xi1>, vector<4x256xf32>
    %c48_72 = arith.constant 48 : index
    %c256_73 = arith.constant 256 : index
    %84 = vector.load %arg5[%c48_72, %c256_73] : memref<72x512xf32, #tpu.memory_space<vmem>>, vector<4x256xf32>
    tpu.vector_store %arg5[%c48_72, %c256_73], %83 {strides = array<i32>} : memref<72x512xf32, #tpu.memory_space<vmem>>, vector<4x256xf32>,
    %c0_74 = arith.constant 0 : index
    %c144_75 = arith.constant 144 : index
    %85 = vector.load %arg4[%c0_74, %c144_75] : memref<4x512xf32, #tpu.memory_space<vmem>>, vector<4x256xf32>
    %c56_76 = arith.constant 56 : index
    %c256_77 = arith.constant 256 : index
    %86 = vector.load %arg5[%c56_76, %c256_77] : memref<72x512xf32, #tpu.memory_space<vmem>>, vector<4x256xf32>
    tpu.vector_store %arg5[%c56_76, %c256_77], %85 {strides = array<i32>} : memref<72x512xf32, #tpu.memory_space<vmem>>, vector<4x256xf32>,
    %c0_78 = arith.constant 0 : index
    %c145_79 = arith.constant 145 : index
    %87 = vector.load %arg4[%c0_78, %c145_79] : memref<4x512xf32, #tpu.memory_space<vmem>>, vector<4x256xf32>
    %cst_80 = arith.constant 0.000000e+00 : f32
    %88 = vector.broadcast %cst_80 : f32 to vector<4x256xf32>
    %89 = arith.select %20, %87, %88 : vector<4x256xi1>, vector<4x256xf32>
    %c64_81 = arith.constant 64 : index
    %c256_82 = arith.constant 256 : index
    %90 = vector.load %arg5[%c64_81, %c256_82] : memref<72x512xf32, #tpu.memory_space<vmem>>, vector<4x256xf32>
    tpu.vector_store %arg5[%c64_81, %c256_82], %89 {strides = array<i32>} : memref<72x512xf32, #tpu.memory_space<vmem>>, vector<4x256xf32>,
    %c0_83 = arith.constant 0 : index
    %c0_84 = arith.constant 0 : index
    %91 = vector.load %arg1[%c0_83, %c0_84] : memref<8x72xf32, #tpu.memory_space<vmem>>, vector<8x72xf32>
    %c0_85 = arith.constant 0 : index
    %c0_86 = arith.constant 0 : index
    %92 = vector.load %arg5[%c0_85, %c0_86] : memref<72x512xf32, #tpu.memory_space<vmem>>, vector<72x512xf32>
    %cst_87 = arith.constant dense<0.000000e+00> : vector<8x512xf32>
    %93 = tpu.matmul %91, %92, %cst_87 {dimension_numbers = #tpu.dot_dimension_numbers<[1], [0], [0], [1], [0, 0, 1, 1], [], []>} : vector<8x72xf32>, vector<72x512xf32>, vector<8x512xf32> -> vector<8x512xf32>
    %cst_88 = arith.constant dense<0.000000e+00> : vector<8xf32>
    %94 = vector.multi_reduction <add>, %93, %cst_88 [1] : vector<8x512xf32> to vector<8xf32>
    %95 = vector.shape_cast %94 : vector<8xf32> to vector<8x1xf32>
    %cst_89 = arith.constant 5.120000e+02 : f32
    %96 = vector.broadcast %cst_89 : f32 to vector<8x1xf32>
    %97 = arith.divf %95, %96 : vector<8x1xf32>
    %98 = vector.broadcast %97 : vector<8x1xf32> to vector<8x512xf32>
    %99 = arith.subf %93, %98 : vector<8x512xf32>
    %100 = arith.mulf %99, %99 : vector<8x512xf32>
    %cst_90 = arith.constant dense<0.000000e+00> : vector<8xf32>
    %101 = vector.multi_reduction <add>, %100, %cst_90 [1] : vector<8x512xf32> to vector<8xf32>
    %102 = vector.shape_cast %101 : vector<8xf32> to vector<8x1xf32>
    %cst_91 = arith.constant 5.120000e+02 : f32
    %103 = vector.broadcast %cst_91 : f32 to vector<8x1xf32>
    %104 = arith.divf %102, %103 : vector<8x1xf32>
    %c0_92 = arith.constant 0 : index
    %c0_93 = arith.constant 0 : index
    %105 = vector.load %arg2[%c0_92, %c0_93] : memref<8x2xf32, #tpu.memory_space<vmem>>, vector<8x1xf32>
    %c0_94 = arith.constant 0 : index
    %c1_95 = arith.constant 1 : index
    %106 = vector.load %arg2[%c0_94, %c1_95] : memref<8x2xf32, #tpu.memory_space<vmem>>, vector<8x1xf32>
    %cst_96 = arith.constant 9.99999974E-6 : f32
    %107 = vector.broadcast %cst_96 : f32 to vector<8x1xf32>
    %108 = arith.addf %104, %107 : vector<8x1xf32>
    %109 = math.rsqrt %108 : vector<8x1xf32>
    %110 = arith.mulf %105, %109 : vector<8x1xf32>
    %111 = vector.broadcast %110 : vector<8x1xf32> to vector<8x512xf32>
    %112 = arith.mulf %99, %111 : vector<8x512xf32>
    %113 = vector.broadcast %106 : vector<8x1xf32> to vector<8x512xf32>
    %114 = arith.addf %112, %113 : vector<8x512xf32>
    %cst_97 = arith.constant 0.000000e+00 : f32
    %115 = vector.broadcast %cst_97 : f32 to vector<8x512xf32>
    %116 = arith.maximumf %114, %115 : vector<8x512xf32>
    %117 = vector.extract_strided_slice %116 {offsets = [0, 0], sizes = [8, 256], strides = [1, 1]} : vector<8x512xf32> to vector<8x256xf32>
    %c0_98 = arith.constant 0 : index
    %c0_99 = arith.constant 0 : index
    %c0_100 = arith.constant 0 : index
    %118 = vector.load %arg3[%c0_98, %c0_99, %c0_100] : memref<2x8x256xf32, #tpu.memory_space<vmem>>, vector<1x8x256xf32>
    %119 = vector.shape_cast %118 : vector<1x8x256xf32> to vector<8x256xf32>
    %120 = vector.shape_cast %117 : vector<8x256xf32> to vector<1x8x256xf32>
    tpu.vector_store %arg3[%c0_98, %c0_99, %c0_100], %120 {strides = array<i32>} : memref<2x8x256xf32, #tpu.memory_space<vmem>>, vector<1x8x256xf32>,
    %121 = vector.extract_strided_slice %116 {offsets = [0, 256], sizes = [8, 256], strides = [1, 1]} : vector<8x512xf32> to vector<8x256xf32>
    %c1_101 = arith.constant 1 : index
    %c0_102 = arith.constant 0 : index
    %c0_103 = arith.constant 0 : index
    %122 = vector.load %arg3[%c1_101, %c0_102, %c0_103] : memref<2x8x256xf32, #tpu.memory_space<vmem>>, vector<1x8x256xf32>
    %123 = vector.shape_cast %122 : vector<1x8x256xf32> to vector<8x256xf32>
    %124 = vector.shape_cast %121 : vector<8x256xf32> to vector<1x8x256xf32>
    tpu.vector_store %arg3[%c1_101, %c0_102, %c0_103], %124 {strides = array<i32>} : memref<2x8x256xf32, #tpu.memory_space<vmem>>, vector<1x8x256xf32>,
    return
  }
}

</mosaic_0001>

<llo_original>
// kernel: conv_batch_norm.1
$region0: #{conv_batch_norm.1}
  #allocation0 [shape = 'u32[]', space=smem, size = 0x4, offset = 0x4, fixed_abs, tag = 'smem constant byte address 0x4 - core index']
  #allocation1 [shape = 'u32[144,128]{1,0:T(1,128)}', space=vmem, size = 0x12000, scoped, tag = 'internal scratch']
  #allocation2 [shape = 'f32[4,512]{1,0:T(4,128)}', space=vmem, size = 0x2000, scoped, tag = 'scratch operand']
  #allocation3 [shape = 'f32[72,512]{1,0:T(8,128)}', space=vmem, size = 0x24000, scoped, tag = 'scratch operand']
  %s0 = inlined_call_operand.vmem [shape: f32[2,4,256], index: 0, kind: input, shape index: {}]
  %s1 = inlined_call_operand.vmem [shape: f32[8,72], index: 1, kind: input, shape index: {}]
  %s2 = inlined_call_operand.vmem [shape: f32[8,2], index: 2, kind: input, shape index: {}]
  %s3 = inlined_call_operand.vmem [shape: f32[2,8,256], index: 3, kind: output, shape index: {}]
  %s4 = sld [smem:[#allocation0]]
  $region22: #{conv_batch_norm.1} parent=0
    _
  %s6 = ssub.s32 1, %s4
  %s7 = scalar_select 0, %s6, %s4
  // Predicated region
  $region2: #{conv_batch_norm.1} parent=0 // pred_check
    _
  $region3: #{conv_batch_norm.1} parent=0 // pred_check_branch
    %9 = sbr.rel (0) target = $region5
  $region4: #{conv_batch_norm.1} parent=0 // pred_region
    _
  $region5: #{conv_batch_norm.1} parent=0 // pred_fallthru
    _
  // Predicated region
  $region6: #{conv_batch_norm.1} parent=0 // pred_check
    _
  $region7: #{conv_batch_norm.1} parent=0 // pred_check_branch
    %11 = sbr.rel (0) target = $region9
  $region8: #{conv_batch_norm.1} parent=0 // pred_region
    _
  $region9: #{conv_batch_norm.1} parent=0 // pred_fallthru
    _
  // Predicated region
  $region10: #{conv_batch_norm.1} parent=0 // pred_check
    _
  $region11: #{conv_batch_norm.1} parent=0 // pred_check_branch
    %13 = sbr.rel (0) target = $region13
  $region12: #{conv_batch_norm.1} parent=0 // pred_region
    _
  $region13: #{conv_batch_norm.1} parent=0 // pred_fallthru
    _
  %v14 = vlaneseq
  %v15 = vand.u32 %v14, 127
  %v16 = vadd.s32 %v15, 128
  %vm17 = vcmp.lt.s32.totalorder %v15, 0
  %v18 = vsub.s32 0, %v15
  %v19 = vsel %vm17, %v18, %v15
  %v20 = vshrl.u32 %v19, 4
  %v21 = vand.u32 %v19, 15
  %v22 = vsub.s32 0, %v21
  %v23 = vsel %vm17, %v22, %v21
  %vm24 = vcmp.lt.s32.totalorder %v16, 0
  %v25 = vsub.s32 0, %v16
  %v26 = vsel %vm24, %v25, %v16
  %v27 = vshrl.u32 %v26, 4
  %v28 = vand.u32 %v26, 15
  %v29 = vsub.s32 0, %v28
  %v30 = vsel %vm24, %v29, %v28
  %vm31 = vcmp.ne.s32.totalorder %v23, 0
  %vm32 = vcmp.ne.s32.totalorder %v30, 0
  %vm33 = vcmp.lt.s32.totalorder %v23, 0
  %vm34 = vcmp.lt.s32.totalorder %v30, 0
  %vm35 = vmand %vm33, %vm31
  %vm36 = vmand %vm34, %vm32
  %v37 = vadd.s32 %v23, 16
  %v38 = vadd.s32 %v30, 16
  %v39 = vsel %vm35, %v37, %v23
  %v40 = vsel %vm36, %v38, %v30
  %vm41 = vcmp.ge.s32.totalorder %v39, 1
  %vm42 = vcmp.ge.s32.totalorder %v40, 1
  %vm43 = vcmp.le.s32.totalorder %v39, 14
  %vm44 = vcmp.le.s32.totalorder %v40, 14
  %45 = vst [vmem:[#allocation2] sm:$0xff] 0.0
  %46 = vst [vmem:[#allocation2 + $0x8] sm:$0xff] 0.0
  %47 = vst [vmem:[#allocation3] sm:$0xff] 0.0
  %48 = vst [vmem:[#allocation3 + $0x8] sm:$0xff] 0.0
  %49 = vst [vmem:[#allocation3 + $0x10] sm:$0xff] 0.0
  %50 = vst [vmem:[#allocation3 + $0x18] sm:$0xff] 0.0
  %51 = vst [vmem:[#allocation3 + $0x20] sm:$0xff] 0.0
  %52 = vst [vmem:[#allocation3 + $0x28] sm:$0xff] 0.0
  %53 = vst [vmem:[#allocation3 + $0x30] sm:$0xff] 0.0
  %54 = vst [vmem:[#allocation3 + $0x38] sm:$0xff] 0.0
  %55 = vst [vmem:[#allocation3 + $0x40] sm:$0xff] 0.0
  %56 = vst [vmem:[#allocation3 + $0x48] sm:$0xff] 0.0
  %57 = vst [vmem:[#allocation3 + $0x50] sm:$0xff] 0.0
  %58 = vst [vmem:[#allocation3 + $0x58] sm:$0xff] 0.0
  %59 = vst [vmem:[#allocation3 + $0x60] sm:$0xff] 0.0
  %60 = vst [vmem:[#allocation3 + $0x68] sm:$0xff] 0.0
  %61 = vst [vmem:[#allocation3 + $0x70] sm:$0xff] 0.0
  %62 = vst [vmem:[#allocation3 + $0x78] sm:$0xff] 0.0
  %63 = vst [vmem:[#allocation3 + $0x80] sm:$0xff] 0.0
  %64 = vst [vmem:[#allocation3 + $0x88] sm:$0xff] 0.0
  %65 = vst [vmem:[#allocation3 + $0x90] sm:$0xff] 0.0
  %66 = vst [vmem:[#allocation3 + $0x98] sm:$0xff] 0.0
  %67 = vst [vmem:[#allocation3 + $0xa0] sm:$0xff] 0.0
  %68 = vst [vmem:[#allocation3 + $0xa8] sm:$0xff] 0.0
  %69 = vst [vmem:[#allocation3 + $0xb0] sm:$0xff] 0.0
  %70 = vst [vmem:[#allocation3 + $0xb8] sm:$0xff] 0.0
  %71 = vst [vmem:[#allocation3 + $0xc0] sm:$0xff] 0.0
  %72 = vst [vmem:[#allocation3 + $0xc8] sm:$0xff] 0.0
  %73 = vst [vmem:[#allocation3 + $0xd0] sm:$0xff] 0.0
  %74 = vst [vmem:[#allocation3 + $0xd8] sm:$0xff] 0.0
  %75 = vst [vmem:[#allocation3 + $0xe0] sm:$0xff] 0.0
  %76 = vst [vmem:[#allocation3 + $0xe8] sm:$0xff] 0.0
  %77 = vst [vmem:[#allocation3 + $0xf0] sm:$0xff] 0.0
  %78 = vst [vmem:[#allocation3 + $0xf8] sm:$0xff] 0.0
  %79 = vst [vmem:[#allocation3 + $0x100] sm:$0xff] 0.0
  %80 = vst [vmem:[#allocation3 + $0x108] sm:$0xff] 0.0
  %81 = vst [vmem:[#allocation3 + $0x110] sm:$0xff] 0.0
  %82 = vst [vmem:[#allocation3 + $0x118] sm:$0xff] 0.0
  %v83 = vld [vmem:[%s0] sm:$0xff]
  %84 = vst [vmem:[#allocation2 + $0x4] sm:$0xff] %v83
  %v85 = vld [vmem:[#allocation2] sm:$0xff]
  %v86 = vld [vmem:[#allocation2 + $0x8] sm:$0xf]
  %v89 = vcombine.high %v85, %v85
  %90 = vrot.lane.b32.xlu0 %v85, 17
  %v91 = vpop.permute.xlu0 %90
  %92 = vrot.lane.b32.xlu0 %v89, 17
  %v93 = vpop.permute.xlu0 %92
  %94 = vrot.lane.b32.xlu0 %v86, 17
  %v95 = vpop.permute.xlu0 %94
  %vm96 = vcmask 138240
  %v97 = vsel %vm96, %v91, %v93
  %v98 = vsel %vm96, %v93, %v95
  %v101 = vsel %vm41, %v97, 0.0
  %v102 = vsel %vm42, %v98, 0.0
  %103 = vst [vmem:[#allocation3] sm:$0xf] %v101
  %104 = vst [vmem:[#allocation3 + $0x8] sm:$0xf] %v102
  %v105 = vld [vmem:[#allocation2] sm:$0xff]
  %v106 = vld [vmem:[#allocation2 + $0x8] sm:$0xf]
  %v109 = vcombine.high %v105, %v105
  %110 = vrot.lane.b32.xlu0 %v105, 16
  %v111 = vpop.permute.xlu0 %110
  %112 = vrot.lane.b32.xlu0 %v109, 16
  %v113 = vpop.permute.xlu0 %112
  %114 = vrot.lane.b32.xlu0 %v106, 16
  %v115 = vpop.permute.xlu0 %114
  %vm116 = vcmask 130048
  %v117 = vsel %vm116, %v111, %v113
  %v118 = vsel %vm116, %v113, %v115
  %121 = vst [vmem:[#allocation3 + $0x20] sm:$0xf] %v117
  %122 = vst [vmem:[#allocation3 + $0x28] sm:$0xf] %v118
  %v123 = vld [vmem:[#allocation2] sm:$0xff]
  %v124 = vld [vmem:[#allocation2 + $0x8] sm:$0xf]
  %v127 = vcombine.high %v123, %v123
  %128 = vrot.lane.b32.xlu0 %v123, 15
  %v129 = vpop.permute.xlu0 %128
  %130 = vrot.lane.b32.xlu0 %v127, 15
  %v131 = vpop.permute.xlu0 %130
  %132 = vrot.lane.b32.xlu0 %v124, 15
  %v133 = vpop.permute.xlu0 %132
  %vm134 = vcmask 121856
  %v135 = vsel %vm134, %v129, %v131
  %v136 = vsel %vm134, %v131, %v133
  %v139 = vsel %vm43, %v135, 0.0
  %v140 = vsel %vm44, %v136, 0.0
  %141 = vst [vmem:[#allocation3 + $0x40] sm:$0xf] %v139
  %142 = vst [vmem:[#allocation3 + $0x48] sm:$0xf] %v140
  %v143 = vld [vmem:[#allocation2] sm:$0xff]
  %v144 = vld [vmem:[#allocation2 + $0x8] sm:$0xf]
  %v147 = vcombine.high %v143, %v143
  %148 = vrot.lane.b32.xlu0 %v143, 1
  %v149 = vpop.permute.xlu0 %148
  %150 = vrot.lane.b32.xlu0 %v147, 1
  %v151 = vpop.permute.xlu0 %150
  %152 = vrot.lane.b32.xlu0 %v144, 1
  %v153 = vpop.permute.xlu0 %152
  %vm154 = vcmask 7168
  %v155 = vsel %vm154, %v149, %v151
  %v156 = vsel %vm154, %v151, %v153
  %v159 = vsel %vm41, %v155, 0.0
  %v160 = vsel %vm42, %v156, 0.0
  %161 = vst [vmem:[#allocation3 + $0x60] sm:$0xf] %v159
  %162 = vst [vmem:[#allocation3 + $0x68] sm:$0xf] %v160
  %v163 = vld [vmem:[#allocation2 + $0x4] sm:$0xff]
  %v165 = vcombine.high %v163, %v163
  %167 = vst [vmem:[#allocation3 + $0x80] sm:$0xf] %v163
  %168 = vst [vmem:[#allocation3 + $0x88] sm:$0xf] %v165
  %v169 = vld [vmem:[#allocation2 + $0x4] sm:$0xff]
  %v170 = vld [vmem:[#allocation2 + $0xc] sm:$0xf]
  %v173 = vcombine.high %v169, %v169
  %174 = vrot.lane.b32.xlu0 %v169, 127
  %v175 = vpop.permute.xlu0 %174
  %176 = vrot.lane.b32.xlu0 %v173, 127
  %v177 = vpop.permute.xlu0 %176
  %178 = vrot.lane.b32.xlu0 %v170, 127
  %v179 = vpop.permute.xlu0 %178
  %vm180 = vcmask 1039360
  %v181 = vsel %vm180, %v175, %v177
  %v182 = vsel %vm180, %v177, %v179
  %v185 = vsel %vm43, %v181, 0.0
  %v186 = vsel %vm44, %v182, 0.0
  %187 = vst [vmem:[#allocation3 + $0xa0] sm:$0xf] %v185
  %188 = vst [vmem:[#allocation3 + $0xa8] sm:$0xf] %v186
  %v189 = vld [vmem:[#allocation2 + $0x4] sm:$0xff]
  %v190 = vld [vmem:[#allocation2 + $0xc] sm:$0xf]
  %v193 = vcombine.high %v189, %v189
  %194 = vrot.lane.b32.xlu0 %v189, 113
  %v195 = vpop.permute.xlu0 %194
  %196 = vrot.lane.b32.xlu0 %v193, 113
  %v197 = vpop.permute.xlu0 %196
  %198 = vrot.lane.b32.xlu0 %v190, 113
  %v199 = vpop.permute.xlu0 %198
  %vm200 = vcmask 924672
  %v201 = vsel %vm200, %v195, %v197
  %v202 = vsel %vm200, %v197, %v199
  %v205 = vsel %vm41, %v201, 0.0
  %v206 = vsel %vm42, %v202, 0.0
  %207 = vst [vmem:[#allocation3 + $0xc0] sm:$0xf] %v205
  %208 = vst [vmem:[#allocation3 + $0xc8] sm:$0xf] %v206
  %v209 = vld [vmem:[#allocation2 + $0x4] sm:$0xff]
  %v210 = vld [vmem:[#allocation2 + $0xc] sm:$0xf]
  %v213 = vcombine.high %v209, %v209
  %214 = vrot.lane.b32.xlu0 %v209, 112
  %v215 = vpop.permute.xlu0 %214
  %216 = vrot.lane.b32.xlu0 %v213, 112
  %v217 = vpop.permute.xlu0 %216
  %218 = vrot.lane.b32.xlu0 %v210, 112
  %v219 = vpop.permute.xlu0 %218
  %vm220 = vcmask 916480
  %v221 = vsel %vm220, %v215, %v217
  %v222 = vsel %vm220, %v217, %v219
  %225 = vst [vmem:[#allocation3 + $0xe0] sm:$0xf] %v221
  %226 = vst [vmem:[#allocation3 + $0xe8] sm:$0xf] %v222
  %v227 = vld [vmem:[#allocation2 + $0x4] sm:$0xff]
  %v228 = vld [vmem:[#allocation2 + $0xc] sm:$0xf]
  %v231 = vcombine.high %v227, %v227
  %232 = vrot.lane.b32.xlu0 %v227, 111
  %v233 = vpop.permute.xlu0 %232
  %234 = vrot.lane.b32.xlu0 %v231, 111
  %v235 = vpop.permute.xlu0 %234
  %236 = vrot.lane.b32.xlu0 %v228, 111
  %v237 = vpop.permute.xlu0 %236
  %vm238 = vcmask 908288
  %v239 = vsel %vm238, %v233, %v235
  %v240 = vsel %vm238, %v235, %v237
  %v243 = vsel %vm43, %v239, 0.0
  %v244 = vsel %vm44, %v240, 0.0
  %245 = vst [vmem:[#allocation3 + $0x100] sm:$0xf] %v243
  %246 = vst [vmem:[#allocation3 + $0x108] sm:$0xf] %v244
  %s247 = scalar_lea.vmem %s0, 8
  %v248 = vld [vmem:[%s247] sm:$0xff]
  %249 = vst [vmem:[#allocation2 + $0x4] sm:$0xff] %v248
  %v250 = vld [vmem:[#allocation2] sm:$0xff]
  %v251 = vld [vmem:[#allocation2 + $0x8] sm:$0xf]
  %v254 = vcombine.high %v250, %v250
  %255 = vrot.lane.b32.xlu0 %v250, 17
  %v256 = vpop.permute.xlu0 %255
  %257 = vrot.lane.b32.xlu0 %v254, 17
  %v258 = vpop.permute.xlu0 %257
  %259 = vrot.lane.b32.xlu0 %v251, 17
  %v260 = vpop.permute.xlu0 %259
  %v261 = vsel %vm96, %v256, %v258
  %v262 = vsel %vm96, %v258, %v260
  %v265 = vsel %vm41, %v261, 0.0
  %v266 = vsel %vm42, %v262, 0.0
  %267 = vst [vmem:[#allocation3 + $0x10] sm:$0xf] %v265
  %268 = vst [vmem:[#allocation3 + $0x18] sm:$0xf] %v266
  %v269 = vld [vmem:[#allocation2] sm:$0xff]
  %v270 = vld [vmem:[#allocation2 + $0x8] sm:$0xf]
  %v273 = vcombine.high %v269, %v269
  %274 = vrot.lane.b32.xlu0 %v269, 16
  %v275 = vpop.permute.xlu0 %274
  %276 = vrot.lane.b32.xlu0 %v273, 16
  %v277 = vpop.permute.xlu0 %276
  %278 = vrot.lane.b32.xlu0 %v270, 16
  %v279 = vpop.permute.xlu0 %278
  %v280 = vsel %vm116, %v275, %v277
  %v281 = vsel %vm116, %v277, %v279
  %284 = vst [vmem:[#allocation3 + $0x30] sm:$0xf] %v280
  %285 = vst [vmem:[#allocation3 + $0x38] sm:$0xf] %v281
  %v286 = vld [vmem:[#allocation2] sm:$0xff]
  %v287 = vld [vmem:[#allocation2 + $0x8] sm:$0xf]
  %v290 = vcombine.high %v286, %v286
  %291 = vrot.lane.b32.xlu0 %v286, 15
  %v292 = vpop.permute.xlu0 %291
  %293 = vrot.lane.b32.xlu0 %v290, 15
  %v294 = vpop.permute.xlu0 %293
  %295 = vrot.lane.b32.xlu0 %v287, 15
  %v296 = vpop.permute.xlu0 %295
  %v297 = vsel %vm134, %v292, %v294
  %v298 = vsel %vm134, %v294, %v296
  %v301 = vsel %vm43, %v297, 0.0
  %v302 = vsel %vm44, %v298, 0.0
  %303 = vst [vmem:[#allocation3 + $0x50] sm:$0xf] %v301
  %304 = vst [vmem:[#allocation3 + $0x58] sm:$0xf] %v302
  %v305 = vld [vmem:[#allocation2] sm:$0xff]
  %v306 = vld [vmem:[#allocation2 + $0x8] sm:$0xf]
  %v309 = vcombine.high %v305, %v305
  %310 = vrot.lane.b32.xlu0 %v305, 1
  %v311 = vpop.permute.xlu0 %310
  %312 = vrot.lane.b32.xlu0 %v309, 1
  %v313 = vpop.permute.xlu0 %312
  %314 = vrot.lane.b32.xlu0 %v306, 1
  %v315 = vpop.permute.xlu0 %314
  %v316 = vsel %vm154, %v311, %v313
  %v317 = vsel %vm154, %v313, %v315
  %v320 = vsel %vm41, %v316, 0.0
  %v321 = vsel %vm42, %v317, 0.0
  %322 = vst [vmem:[#allocation3 + $0x70] sm:$0xf] %v320
  %323 = vst [vmem:[#allocation3 + $0x78] sm:$0xf] %v321
  %v324 = vld [vmem:[#allocation2 + $0x4] sm:$0xff]
  %v326 = vcombine.high %v324, %v324
  %328 = vst [vmem:[#allocation3 + $0x90] sm:$0xf] %v324
  %329 = vst [vmem:[#allocation3 + $0x98] sm:$0xf] %v326
  %v330 = vld [vmem:[#allocation2 + $0x4] sm:$0xff]
  %v331 = vld [vmem:[#allocation2 + $0xc] sm:$0xf]
  %v334 = vcombine.high %v330, %v330
  %335 = vrot.lane.b32.xlu0 %v330, 127
  %v336 = vpop.permute.xlu0 %335
  %337 = vrot.lane.b32.xlu0 %v334, 127
  %v338 = vpop.permute.xlu0 %337
  %339 = vrot.lane.b32.xlu0 %v331, 127
  %v340 = vpop.permute.xlu0 %339
  %v341 = vsel %vm180, %v336, %v338
  %v342 = vsel %vm180, %v338, %v340
  %v345 = vsel %vm43, %v341, 0.0
  %v346 = vsel %vm44, %v342, 0.0
  %347 = vst [vmem:[#allocation3 + $0xb0] sm:$0xf] %v345
  %348 = vst [vmem:[#allocation3 + $0xb8] sm:$0xf] %v346
  %v349 = vld [vmem:[#allocation2 + $0x4] sm:$0xff]
  %v350 = vld [vmem:[#allocation2 + $0xc] sm:$0xf]
  %v353 = vcombine.high %v349, %v349
  %354 = vrot.lane.b32.xlu0 %v349, 113
  %v355 = vpop.permute.xlu0 %354
  %356 = vrot.lane.b32.xlu0 %v353, 113
  %v357 = vpop.permute.xlu0 %356
  %358 = vrot.lane.b32.xlu0 %v350, 113
  %v359 = vpop.permute.xlu0 %358
  %v360 = vsel %vm200, %v355, %v357
  %v361 = vsel %vm200, %v357, %v359
  %v364 = vsel %vm41, %v360, 0.0
  %v365 = vsel %vm42, %v361, 0.0
  %366 = vst [vmem:[#allocation3 + $0xd0] sm:$0xf] %v364
  %367 = vst [vmem:[#allocation3 + $0xd8] sm:$0xf] %v365
  %v368 = vld [vmem:[#allocation2 + $0x4] sm:$0xff]
  %v369 = vld [vmem:[#allocation2 + $0xc] sm:$0xf]
  %v372 = vcombine.high %v368, %v368
  %373 = vrot.lane.b32.xlu0 %v368, 112
  %v374 = vpop.permute.xlu0 %373
  %375 = vrot.lane.b32.xlu0 %v372, 112
  %v376 = vpop.permute.xlu0 %375
  %377 = vrot.lane.b32.xlu0 %v369, 112
  %v378 = vpop.permute.xlu0 %377
  %v379 = vsel %vm220, %v374, %v376
  %v380 = vsel %vm220, %v376, %v378
  %383 = vst [vmem:[#allocation3 + $0xf0] sm:$0xf] %v379
  %384 = vst [vmem:[#allocation3 + $0xf8] sm:$0xf] %v380
  %v385 = vld [vmem:[#allocation2 + $0x4] sm:$0xff]
  %v386 = vld [vmem:[#allocation2 + $0xc] sm:$0xf]
  %v389 = vcombine.high %v385, %v385
  %390 = vrot.lane.b32.xlu0 %v385, 111
  %v391 = vpop.permute.xlu0 %390
  %392 = vrot.lane.b32.xlu0 %v389, 111
  %v393 = vpop.permute.xlu0 %392
  %394 = vrot.lane.b32.xlu0 %v386, 111
  %v395 = vpop.permute.xlu0 %394
  %v396 = vsel %vm238, %v391, %v393
  %v397 = vsel %vm238, %v393, %v395
  %v400 = vsel %vm43, %v396, 0.0
  %v401 = vsel %vm44, %v397, 0.0
  %402 = vst [vmem:[#allocation3 + $0x110] sm:$0xf] %v400
  %403 = vst [vmem:[#allocation3 + $0x118] sm:$0xf] %v401
  %v404 = vld [vmem:[%s1] sm:$0xff]
  %v405 = vld [vmem:[#allocation3] sm:$0xff]
  %v406 = vld [vmem:[#allocation3 + $0x8] sm:$0xff]
  %v407 = vld [vmem:[#allocation3 + $0x10] sm:$0xff]
  %v408 = vld [vmem:[#allocation3 + $0x18] sm:$0xff]
  %v409 = vld [vmem:[#allocation3 + $0x20] sm:$0xff]
  %v410 = vld [vmem:[#allocation3 + $0x28] sm:$0xff]
  %v411 = vld [vmem:[#allocation3 + $0x30] sm:$0xff]
  %v412 = vld [vmem:[#allocation3 + $0x38] sm:$0xff]
  %v413 = vld [vmem:[#allocation3 + $0x40] sm:$0xff]
  %v414 = vld [vmem:[#allocation3 + $0x48] sm:$0xff]
  %v415 = vld [vmem:[#allocation3 + $0x50] sm:$0xff]
  %v416 = vld [vmem:[#allocation3 + $0x58] sm:$0xff]
  %v417 = vld [vmem:[#allocation3 + $0x60] sm:$0xff]
  %v418 = vld [vmem:[#allocation3 + $0x68] sm:$0xff]
  %v419 = vld [vmem:[#allocation3 + $0x70] sm:$0xff]
  %v420 = vld [vmem:[#allocation3 + $0x78] sm:$0xff]
  %v421 = vld [vmem:[#allocation3 + $0x80] sm:$0xff]
  %v422 = vld [vmem:[#allocation3 + $0x88] sm:$0xff]
  %v423 = vld [vmem:[#allocation3 + $0x90] sm:$0xff]
  %v424 = vld [vmem:[#allocation3 + $0x98] sm:$0xff]
  %v425 = vld [vmem:[#allocation3 + $0xa0] sm:$0xff]
  %v426 = vld [vmem:[#allocation3 + $0xa8] sm:$0xff]
  %v427 = vld [vmem:[#allocation3 + $0xb0] sm:$0xff]
  %v428 = vld [vmem:[#allocation3 + $0xb8] sm:$0xff]
  %v429 = vld [vmem:[#allocation3 + $0xc0] sm:$0xff]
  %v430 = vld [vmem:[#allocation3 + $0xc8] sm:$0xff]
  %v431 = vld [vmem:[#allocation3 + $0xd0] sm:$0xff]
  %v432 = vld [vmem:[#allocation3 + $0xd8] sm:$0xff]
  %v433 = vld [vmem:[#allocation3 + $0xe0] sm:$0xff]
  %v434 = vld [vmem:[#allocation3 + $0xe8] sm:$0xff]
  %v435 = vld [vmem:[#allocation3 + $0xf0] sm:$0xff]
  %v436 = vld [vmem:[#allocation3 + $0xf8] sm:$0xff]
  %v437 = vld [vmem:[#allocation3 + $0x100] sm:$0xff]
  %v438 = vld [vmem:[#allocation3 + $0x108] sm:$0xff]
  %v439 = vld [vmem:[#allocation3 + $0x110] sm:$0xff]
  %v440 = vld [vmem:[#allocation3 + $0x118] sm:$0xff]
  %vm441 = vcmask 588800
  %v443 = vsel %vm441, %v404, 0
  %445 = vmatprep.subr.mxu0 0.0
  %446 = vmatpush1.msra.mxu0 0.0
  %447 = vmatprep.subr.mxu0 0.0
  %448 = vmatpush1.msra.mxu0 0.0
  %449 = vmatprep.subr.mxu0 0.0
  %450 = vmatpush1.msra.mxu0 0.0
  %451 = vmatprep.subr.mxu0 0.0
  %452 = vmatpush1.msra.mxu0 0.0
  %453 = vmatprep.subr.mxu0 0.0
  %454 = vmatpush1.msra.mxu0 0.0
  %455 = vmatprep.subr.mxu0 0.0
  %456 = vmatpush1.msra.mxu0 0.0
  %457 = vmatprep.subr.mxu0 0.0
  %458 = vmatpush1.msra.mxu0 0.0
  %459 = vmatprep.subr.mxu0 %v438
  %460 = vmatpush1.msra.mxu0 %v437
  %461 = vmatprep.subr.mxu0 %v434
  %462 = vmatpush1.msra.mxu0 %v433
  %463 = vmatprep.subr.mxu0 %v430
  %464 = vmatpush1.msra.mxu0 %v429
  %465 = vmatprep.subr.mxu0 %v426
  %466 = vmatpush1.msra.mxu0 %v425
  %467 = vmatprep.subr.mxu0 %v422
  %468 = vmatpush1.msra.mxu0 %v421
  %469 = vmatprep.subr.mxu0 %v418
  %470 = vmatpush1.msra.mxu0 %v417
  %471 = vmatprep.subr.mxu0 %v414
  %472 = vmatpush1.msra.mxu0 %v413
  %473 = vmatprep.subr.mxu0 %v410
  %474 = vmatpush1.msra.mxu0 %v409
  %475 = vmatprep.subr.mxu0 %v406
  %476 = vmatpush1.msra.mxu0 %v405
  %477 = vmatprep.subr.mxu0 0.0
  %478 = vmatpush2.msra.mxu0 0.0
  %479 = vmatprep.subr.mxu0 0.0
  %480 = vmatpush2.msra.mxu0 0.0
  %481 = vmatprep.subr.mxu0 0.0
  %482 = vmatpush2.msra.mxu0 0.0
  %483 = vmatprep.subr.mxu0 0.0
  %484 = vmatpush2.msra.mxu0 0.0
  %485 = vmatprep.subr.mxu0 0.0
  %486 = vmatpush2.msra.mxu0 0.0
  %487 = vmatprep.subr.mxu0 0.0
  %488 = vmatpush2.msra.mxu0 0.0
  %489 = vmatprep.subr.mxu0 0.0
  %490 = vmatpush2.msra.mxu0 0.0
  %491 = vmatprep.subr.mxu0 0.0
  %492 = vmatpush2.msra.mxu0 0.0
  %493 = vmatprep.subr.mxu0 0.0
  %494 = vmatpush2.msra.mxu0 0.0
  %495 = vmatprep.subr.mxu0 0.0
  %496 = vmatpush2.msra.mxu0 0.0
  %497 = vmatprep.subr.mxu0 0.0
  %498 = vmatpush2.msra.mxu0 0.0
  %499 = vmatprep.subr.mxu0 0.0
  %500 = vmatpush2.msra.mxu0 0.0
  %501 = vmatprep.subr.mxu0 0.0
  %502 = vmatpush2.msra.mxu0 0.0
  %503 = vmatprep.subr.mxu0 0.0
  %504 = vmatpush2.msra.mxu0 0.0
  %505 = vmatprep.subr.mxu0 0.0
  %506 = vmatpush2.msra.mxu0 0.0
  %507 = vmatprep.subr.mxu0 0.0
  %508 = vmatpush2.msra.mxu0 0.0
  %509 = vmatprep.mubr.f32.mxu0 0.0
  %510 = vmatmul.mubr.f32.gmra.mxu0 %v443
  %v511 = vpop.f32.mrf.mxu0
  %v512 = vadd.f32 0.0, %v511
  %v513 = vpop.f32.mrf.mxu0
  %v514 = vadd.f32 0.0, %v513
  %515 = vdwg.mxu0
  %516 = vmatprep.subr.mxu0 0.0
  %517 = vmatpush1.msra.mxu0 0.0
  %518 = vmatprep.subr.mxu0 0.0
  %519 = vmatpush1.msra.mxu0 0.0
  %520 = vmatprep.subr.mxu0 0.0
  %521 = vmatpush1.msra.mxu0 0.0
  %522 = vmatprep.subr.mxu0 0.0
  %523 = vmatpush1.msra.mxu0 0.0
  %524 = vmatprep.subr.mxu0 0.0
  %525 = vmatpush1.msra.mxu0 0.0
  %526 = vmatprep.subr.mxu0 0.0
  %527 = vmatpush1.msra.mxu0 0.0
  %528 = vmatprep.subr.mxu0 0.0
  %529 = vmatpush1.msra.mxu0 0.0
  %530 = vmatprep.subr.mxu0 %v440
  %531 = vmatpush1.msra.mxu0 %v439
  %532 = vmatprep.subr.mxu0 %v436
  %533 = vmatpush1.msra.mxu0 %v435
  %534 = vmatprep.subr.mxu0 %v432
  %535 = vmatpush1.msra.mxu0 %v431
  %536 = vmatprep.subr.mxu0 %v428
  %537 = vmatpush1.msra.mxu0 %v427
  %538 = vmatprep.subr.mxu0 %v424
  %539 = vmatpush1.msra.mxu0 %v423
  %540 = vmatprep.subr.mxu0 %v420
  %541 = vmatpush1.msra.mxu0 %v419
  %542 = vmatprep.subr.mxu0 %v416
  %543 = vmatpush1.msra.mxu0 %v415
  %544 = vmatprep.subr.mxu0 %v412
  %545 = vmatpush1.msra.mxu0 %v411
  %546 = vmatprep.subr.mxu0 %v408
  %547 = vmatpush1.msra.mxu0 %v407
  %548 = vmatprep.subr.mxu0 0.0
  %549 = vmatpush2.msra.mxu0 0.0
  %550 = vmatprep.subr.mxu0 0.0
  %551 = vmatpush2.msra.mxu0 0.0
  %552 = vmatprep.subr.mxu0 0.0
  %553 = vmatpush2.msra.mxu0 0.0
  %554 = vmatprep.subr.mxu0 0.0
  %555 = vmatpush2.msra.mxu0 0.0
  %556 = vmatprep.subr.mxu0 0.0
  %557 = vmatpush2.msra.mxu0 0.0
  %558 = vmatprep.subr.mxu0 0.0
  %559 = vmatpush2.msra.mxu0 0.0
  %560 = vmatprep.subr.mxu0 0.0
  %561 = vmatpush2.msra.mxu0 0.0
  %562 = vmatprep.subr.mxu0 0.0
  %563 = vmatpush2.msra.mxu0 0.0
  %564 = vmatprep.subr.mxu0 0.0
  %565 = vmatpush2.msra.mxu0 0.0
  %566 = vmatprep.subr.mxu0 0.0
  %567 = vmatpush2.msra.mxu0 0.0
  %568 = vmatprep.subr.mxu0 0.0
  %569 = vmatpush2.msra.mxu0 0.0
  %570 = vmatprep.subr.mxu0 0.0
  %571 = vmatpush2.msra.mxu0 0.0
  %572 = vmatprep.subr.mxu0 0.0
  %573 = vmatpush2.msra.mxu0 0.0
  %574 = vmatprep.subr.mxu0 0.0
  %575 = vmatpush2.msra.mxu0 0.0
  %576 = vmatprep.subr.mxu0 0.0
  %577 = vmatpush2.msra.mxu0 0.0
  %578 = vmatprep.subr.mxu0 0.0
  %579 = vmatpush2.msra.mxu0 0.0
  %580 = vmatprep.mubr.f32.mxu0 0.0
  %581 = vmatmul.mubr.f32.gmra.mxu0 %v443
  %v582 = vpop.f32.mrf.mxu0
  %v583 = vadd.f32 0.0, %v582
  %v584 = vpop.f32.mrf.mxu0
  %v585 = vadd.f32 0.0, %v584
  %586 = vdwg.mxu0
  %v587 = vadd.f32 %v512, %v514
  %v588 = vadd.f32 %v587, %v583
  %v589 = vadd.f32 %v588, %v585
  %590 = vadd.xlane.f32.xlu0 %v589
  %v591 = vpop.xlane.xlu0 %590
  %v592 = vrcp.pop 512.0
  %v593 = vmul.f32 %v591, %v592
  %v594 = vsub.f32 %v512, %v593
  %v595 = vsub.f32 %v514, %v593
  %v596 = vsub.f32 %v583, %v593
  %v597 = vsub.f32 %v585, %v593
  %v598 = vmul.f32 %v594, %v594
  %v599 = vmul.f32 %v595, %v595
  %v600 = vmul.f32 %v596, %v596
  %v601 = vmul.f32 %v597, %v597
  %v602 = vadd.f32 %v598, %v599
  %v603 = vadd.f32 %v602, %v600
  %v604 = vadd.f32 %v603, %v601
  %605 = vadd.xlane.f32.xlu0 %v604
  %v606 = vpop.xlane.xlu0 %605
  %v607 = vmul.f32 %v606, %v592
  %v608 = vld [vmem:[%s2] sm:$0xff]
  %v609 = vadd.f32 %v607, 1e-05
  %v610 = vrsqrt.pop %v609
  %v611 = vmul.f32 %v608, %v610
  %613 = vset.pattern.permute.xlu0 0
  %614 = vperm.xlu0 %613, %v611
  %v615 = vpop.permute.xlu0 %614
  %v617 = vmul.f32 %v594, %v615
  %v618 = vmul.f32 %v595, %v615
  %v619 = vmul.f32 %v596, %v615
  %v620 = vmul.f32 %v597, %v615
  %622 = vset.pattern.permute.xlu0 1
  %623 = vperm.xlu0 %622, %v608
  %v624 = vpop.permute.xlu0 %623
  %v626 = vadd.f32 %v617, %v624
  %v627 = vadd.f32 %v618, %v624
  %v628 = vadd.f32 %v619, %v624
  %v629 = vadd.f32 %v620, %v624
  %v630 = vmax.f32 %v626, 0.0
  %v631 = vmax.f32 %v627, 0.0
  %v632 = vmax.f32 %v628, 0.0
  %v633 = vmax.f32 %v629, 0.0
  %634 = vst [vmem:[%s3] sm:$0xff] %v630
  %635 = vst [vmem:[%s3 + $0x8] sm:$0xff] %v631
  %s636 = scalar_lea.vmem %s3, 16
  %637 = vst [vmem:[%s636] sm:$0xff] %v632
  %638 = vst [vmem:[%s636 + $0x8] sm:$0xff] %v633
  // Predicated region
  $region14: #{conv_batch_norm.1} parent=0 // pred_check
    _
  $region15: #{conv_batch_norm.1} parent=0 // pred_check_branch
    %640 = sbr.rel (0) target = $region17
  $region16: #{conv_batch_norm.1} parent=0 // pred_region
    _
  $region17: #{conv_batch_norm.1} parent=0 // pred_fallthru
    _
  // Predicated region
  $region18: #{conv_batch_norm.1} parent=0 // pred_check
    _
  $region19: #{conv_batch_norm.1} parent=0 // pred_check_branch
    %642 = sbr.rel (0) target = $region21
  $region20: #{conv_batch_norm.1} parent=0 // pred_region
    _
  $region21: #{conv_batch_norm.1} parent=0 // pred_fallthru
    _

</llo_original>
